<compile_context>
chip_gen: v6e
topology: v6e:2x2x1
jax: 0.10.0
libtpu: 0.0.40
codegen_flags: <defaults>
</compile_context>

<pallas_src>
import functools

import jax
import jax.numpy as jnp
from jax.experimental import pallas as pl
from jax.experimental.pallas import tpu as pltpu

_TAP_PAD = 8           # pad the 3-tap conv weight to 8 lanes (full-array block -> layout exempt)
_ROWS_PER_STEP = 2048  # target BB*T rows fed to the MXU per grid step


def attr_head_kernel(x_ref, w1_ref, b1_ref, w2_ref, b2_ref, wc_ref, bc_ref,
                     atten_ref, logits_ref):
    BB, T, D = x_ref.shape

    x = x_ref[...]                                   # (BB, T, D) f32
    x2d = x.reshape(BB * T, D)

    # ---- attention_conv: Conv1d(D -> 256, k=1) + ReLU == one row-major MXU matmul ----
    h = jnp.dot(x2d.astype(jnp.bfloat16), w1_ref[...],
                preferred_element_type=jnp.float32) + b1_ref[...]
    h = jnp.maximum(h, 0.0)                          # (BB*T, 256) f32

    # ---- attention_tconv: Conv1d(256 -> 1, k=3, padding=1) + ReLU ----
    # Per-tap channel reduction (taps live in lanes 0..2 of the zero-padded weight):
    u = jnp.dot(h.astype(jnp.bfloat16), w2_ref[...],
                preferred_element_type=jnp.float32)  # (BB*T, 8)
    u3 = u.reshape(BB, T, _TAP_PAD)                  # (BB, T, 8)
    # Zero-padded temporal shift-add as static slices along T (matches Conv1d k=3, pad=1):
    #   a[b, t] = u[b, t-1, 0] + u[b, t, 1] + u[b, t+1, 2] + b2
    zrow = jnp.zeros((BB, 1, 1), jnp.float32)
    prev_tap = jnp.concatenate([zrow, u3[:, :T - 1, 0:1]], axis=1)   # u[b, t-1, 0], zero at t=0
    next_tap = jnp.concatenate([u3[:, 1:, 2:3], zrow], axis=1)       # u[b, t+1, 2], zero at t=T-1
    a = u3[:, :, 1:2] + prev_tap + next_tap + b2_ref[0]
    a = jnp.maximum(a, 0.0)                          # (BB, T, 1)

    # ---- softmax over T (sublane axis; keeps the pooling broadcast relayout-free) ----
    a_max = jnp.max(a, axis=1, keepdims=True)
    e = jnp.exp(a - a_max)
    atten = e / jnp.sum(e, axis=1, keepdims=True)    # (BB, T, 1)
    atten_ref[...] = atten.reshape(BB, T)[None]      # store (1, BB, T)

    # ---- attention-weighted temporal pooling on the VPU (no tiny batched MXU calls) ----
    f = jnp.sum(x * atten, axis=1)                   # (BB, D) f32

    # ---- classifier: Linear(D -> A) ----
    logits = jnp.dot(f, wc_ref[...], preferred_element_type=jnp.float32) + bc_ref[...]
    logits_ref[...] = logits[None]                   # (1, BB, A)


def _num_tensorcores_per_chip():
    """v7x has 2 TensorCores per chip; feed both via >= 2 parallel grid steps."""
    try:
        kind = jax.devices()[0].device_kind.lower()
        return 2 if "v7" in kind else 1
    except Exception:  # CPU / interpret / unknown backend
        return 1


def _pick_batch_block(b, t):
    """Largest batch block with ~_ROWS_PER_STEP MXU rows per step; on multi-TC chips keep at
    least as many grid steps as TensorCores so the parallel grid axis can feed them all."""
    bb = max(1, min(b, max(1, _ROWS_PER_STEP // max(t, 1))))
    min_steps = _num_tensorcores_per_chip()
    if min_steps > 1 and b > 1:
        bb = min(bb, -(-b // min_steps))
    return bb


@functools.partial(jax.jit, static_argnames=("b", "t"))
def attr_classifier_head(x, params, b, t):
    """Returns (softmax attention (b, t), classifier logits (b, attr_len))."""
    w1, b1, w2, b2, wc, bc = params
    D, M = w1.shape
    A = wc.shape[1]
    x = x.reshape(b, t, D).astype(jnp.float32)

    # Host-side weight prep (once per compile):
    #   * MXU operands of the two attention matmuls go in as bf16; accumulation stays f32.
    #   * The 3-tap conv weight is zero-padded to 8 lanes (full-array block, ~4 KiB).
    #   * b2 is a true scalar -> SMEM.
    w1b = w1.astype(jnp.bfloat16)
    w2p = jnp.zeros((M, _TAP_PAD), jnp.float32).at[:, :3].set(w2).astype(jnp.bfloat16)
    b1r = b1.reshape(1, M).astype(jnp.float32)
    b2s = b2.reshape(1).astype(jnp.float32)
    wcf = wc.astype(jnp.float32)
    bcr = bc.reshape(1, A).astype(jnp.float32)

    bb = _pick_batch_block(b, t)
    g = -(-b // bb)                       # ceil(b / bb)
    b_pad = g * bb
    if b_pad != b:                        # pad batch up to a block multiple; sliced off below
        x = jnp.pad(x, ((0, b_pad - b), (0, 0), (0, 0)))

    atten, logits = pl.pallas_call(
        attr_head_kernel,
        out_shape=(
            jax.ShapeDtypeStruct((g, bb, t), jnp.float32),
            jax.ShapeDtypeStruct((g, bb, A), jnp.float32),
        ),
        grid=(g,),
        in_specs=[
            pl.BlockSpec((bb, t, D), lambda i: (i, 0, 0)),          # x  (batch block)
            pl.BlockSpec((D, M), lambda i: (0, 0)),                 # W1 (bf16, resident)
            pl.BlockSpec((1, M), lambda i: (0, 0)),                 # b1
            pl.BlockSpec((M, _TAP_PAD), lambda i: (0, 0)),          # W2 (bf16, padded taps)
            pl.BlockSpec(memory_space=pltpu.MemorySpace.SMEM),      # b2 (scalar)
            pl.BlockSpec((D, A), lambda i: (0, 0)),                 # Wc
            pl.BlockSpec((1, A), lambda i: (0, 0)),                 # bc
        ],
        out_specs=(
            pl.BlockSpec((1, bb, t), lambda i: (i, 0, 0)),          # attention
            pl.BlockSpec((1, bb, A), lambda i: (i, 0, 0)),          # logits
        ),
        compiler_params=pltpu.CompilerParams(
            dimension_semantics=("parallel",),
            vmem_limit_bytes=32 * 1024 * 1024),
    )(x, w1b, b1r, w2p, b2s, wcf, bcr)

    atten = atten.reshape(b_pad, t)[:b]
    logits = logits.reshape(b_pad, A)[:b]
    return atten, logits


if __name__ == "__main__":
    b, t = 2, 8
    feature_dim = 128
    middle_dim = 256          # fixed in the PyTorch module
    attr_len = 16

    keys = jax.random.split(jax.random.PRNGKey(0), 7)
    x = jax.random.normal(keys[0], (b, t, feature_dim), jnp.float32)

    # attention_conv: Conv1d(D, 256, 1) -> weight (256, D, 1); stored transposed as (D, 256)
    w1 = jax.random.normal(keys[1], (feature_dim, middle_dim), jnp.float32) * 0.05
    b1 = jax.random.normal(keys[2], (1, middle_dim), jnp.float32) * 0.05
    # attention_tconv: Conv1d(256, 1, 3, padding=1) -> weight (1, 256, 3); stored as (256, 3)
    w2 = jax.random.normal(keys[3], (middle_dim, 3), jnp.float32) * 0.05
    b2 = jnp.full((1,), 0.1, jnp.float32)
    # classifier: Linear(D, attr_len) -> weight (attr_len, D); stored transposed as (D, attr_len)
    wc = jax.random.normal(keys[4], (feature_dim, attr_len), jnp.float32) * 0.05
    bc = jax.random.normal(keys[5], (1, attr_len), jnp.float32) * 0.05

    params = (w1, b1, w2, b2, wc, bc)

    atten, logits = attr_classifier_head(x, params, b, t)
    jax.block_until_ready((atten, logits))

    # ---- pure-JAX f32 reference (mirrors the PyTorch forward) ----
    h = jnp.maximum(jnp.einsum("btd,dm->btm", x, w1) + b1, 0.0)
    u = jnp.einsum("btm,mk->btk", h, w2)
    a_ref = (u[:, :, 1]
             + jnp.pad(u[:, :-1, 0], ((0, 0), (1, 0)))
             + jnp.pad(u[:, 1:, 2], ((0, 0), (0, 1)))
             + b2[0])
    a_ref = jnp.maximum(a_ref, 0.0)
    atten_ref = jax.nn.softmax(a_ref, axis=1)
    f_ref = jnp.sum(atten_ref[..., None] * x, axis=1)
    logits_ref = f_ref @ wc + bc

    assert atten.shape == (b, t) and logits.shape == (b, attr_len)
    # The kernel uses bf16 MXU operands (f32 accumulation), so compare with loosened tolerances.
    assert jnp.allclose(atten, atten_ref, atol=2e-2, rtol=2e-2), "attention mismatch"
    assert jnp.allclose(logits, logits_ref, atol=2e-2, rtol=2e-2), "logits mismatch"

    print("KERNEL_OK")
</pallas_src>

<mosaic_0001>
module attributes {stable_mosaic.version = 11 : i64} {
  func.func @attr_head_kernel(%arg0: i32, %arg1: memref<2x8x128xf32, #tpu.memory_space<vmem>>, %arg2: memref<128x256xbf16, #tpu.memory_space<vmem>>, %arg3: memref<1x256xf32, #tpu.memory_space<vmem>>, %arg4: memref<256x8xbf16, #tpu.memory_space<vmem>>, %arg5: memref<1xf32, #tpu.memory_space<smem>>, %arg6: memref<128x16xf32, #tpu.memory_space<vmem>>, %arg7: memref<1x16xf32, #tpu.memory_space<vmem>>, %arg8: memref<1x2x8xf32, #tpu.memory_space<vmem>>, %arg9: memref<1x2x16xf32, #tpu.memory_space<vmem>>) attributes {dimension_semantics = [#tpu.dimension_semantics<parallel>], iteration_bounds = array<i64: 1>, scalar_prefetch = 0 : i64, scratch_operands = 0 : i64, tpu.core_type = #tpu.core_type<tc>, window_params = [{transform_indices = @transform_0, window_bounds = array<i64: 2, 8, 128>}, {pipeline_mode = #tpu.pipeline_mode<synchronous>, transform_indices = @transform_1, window_bounds = array<i64: 128, 256>}, {pipeline_mode = #tpu.pipeline_mode<synchronous>, transform_indices = @transform_2, window_bounds = array<i64: 1, 256>}, {pipeline_mode = #tpu.pipeline_mode<synchronous>, transform_indices = @transform_3, window_bounds = array<i64: 256, 8>}, {transform_indices = @transform_4, window_bounds = array<i64: 1>}, {pipeline_mode = #tpu.pipeline_mode<synchronous>, transform_indices = @transform_5, window_bounds = array<i64: 128, 16>}, {pipeline_mode = #tpu.pipeline_mode<synchronous>, transform_indices = @transform_6, window_bounds = array<i64: 1, 16>}, {transform_indices = @transform_7, window_bounds = array<i64: 1, 2, 8>}, {transform_indices = @transform_8, window_bounds = array<i64: 1, 2, 16>}]} {
    %c0 = arith.constant 0 : index
    %c0_0 = arith.constant 0 : index
    %c0_1 = arith.constant 0 : index
    %0 = vector.load %arg1[%c0, %c0_0, %c0_1] : memref<2x8x128xf32, #tpu.memory_space<vmem>>, vector<2x8x128xf32>
    %1 = vector.shape_cast %0 : vector<2x8x128xf32> to vector<16x128xf32>
    %2 = arith.truncf %1 : vector<16x128xf32> to vector<16x128xbf16>
    %c0_2 = arith.constant 0 : index
    %c0_3 = arith.constant 0 : index
    %3 = vector.load %arg2[%c0_2, %c0_3] : memref<128x256xbf16, #tpu.memory_space<vmem>>, vector<128x256xbf16>
    %cst = arith.constant dense<0.000000e+00> : vector<16x256xf32>
    %4 = tpu.matmul %2, %3, %cst {dimension_numbers = #tpu.dot_dimension_numbers<[1], [0], [0], [1], [0, 0, 1, 1], [], []>} : vector<16x128xbf16>, vector<128x256xbf16>, vector<16x256xf32> -> vector<16x256xf32>
    %c0_4 = arith.constant 0 : index
    %c0_5 = arith.constant 0 : index
    %5 = vector.load %arg3[%c0_4, %c0_5] : memref<1x256xf32, #tpu.memory_space<vmem>>, vector<1x256xf32>
    %6 = vector.broadcast %5 : vector<1x256xf32> to vector<16x256xf32>
    %7 = arith.addf %4, %6 : vector<16x256xf32>
    %cst_6 = arith.constant 0.000000e+00 : f32
    %8 = vector.broadcast %cst_6 : f32 to vector<16x256xf32>
    %9 = arith.maximumf %7, %8 : vector<16x256xf32>
    %10 = arith.truncf %9 : vector<16x256xf32> to vector<16x256xbf16>
    %c0_7 = arith.constant 0 : index
    %c0_8 = arith.constant 0 : index
    %11 = vector.load %arg4[%c0_7, %c0_8] : memref<256x8xbf16, #tpu.memory_space<vmem>>, vector<256x8xbf16>
    %cst_9 = arith.constant dense<0.000000e+00> : vector<16x8xf32>
    %12 = tpu.matmul %10, %11, %cst_9 {dimension_numbers = #tpu.dot_dimension_numbers<[1], [0], [0], [1], [0, 0, 1, 1], [], []>} : vector<16x256xbf16>, vector<256x8xbf16>, vector<16x8xf32> -> vector<16x8xf32>
    %13 = vector.shape_cast %12 : vector<16x8xf32> to vector<2x8x8xf32>
    %cst_10 = arith.constant 0.000000e+00 : f32
    %14 = vector.broadcast %cst_10 : f32 to vector<2x1x1xf32>
    %15 = vector.extract_strided_slice %13 {offsets = [0, 0, 0], sizes = [2, 7, 1], strides = [1, 1, 1]} : vector<2x8x8xf32> to vector<2x7x1xf32>
    %16 = tpu.concatenate %14, %15 in 1 : vector<2x1x1xf32>, vector<2x7x1xf32> -> vector<2x8x1xf32>
    %17 = vector.extract_strided_slice %13 {offsets = [0, 1, 2], sizes = [2, 7, 1], strides = [1, 1, 1]} : vector<2x8x8xf32> to vector<2x7x1xf32>
    %18 = tpu.concatenate %17, %14 in 1 : vector<2x7x1xf32>, vector<2x1x1xf32> -> vector<2x8x1xf32>
    %19 = vector.extract_strided_slice %13 {offsets = [0, 0, 1], sizes = [2, 8, 1], strides = [1, 1, 1]} : vector<2x8x8xf32> to vector<2x8x1xf32>
    %20 = arith.addf %19, %16 : vector<2x8x1xf32>
    %21 = arith.addf %20, %18 : vector<2x8x1xf32>
    %c0_11 = arith.constant 0 : index
    %22 = memref.load %arg5[%c0_11] : memref<1xf32, #tpu.memory_space<smem>>
    %23 = vector.broadcast %22 : f32 to vector<2x8x1xf32>
    %24 = arith.addf %21, %23 : vector<2x8x1xf32>
    %cst_12 = arith.constant 0.000000e+00 : f32
    %25 = vector.broadcast %cst_12 : f32 to vector<2x8x1xf32>
    %26 = arith.maximumf %24, %25 : vector<2x8x1xf32>
    %cst_13 = arith.constant dense<0xFF800000> : vector<2x1xf32>
    %27 = vector.multi_reduction <maximumf>, %26, %cst_13 [1] : vector<2x8x1xf32> to vector<2x1xf32>
    %28 = vector.shape_cast %27 : vector<2x1xf32> to vector<2x1x1xf32>
    %29 = vector.broadcast %28 : vector<2x1x1xf32> to vector<2x8x1xf32>
    %30 = arith.subf %26, %29 : vector<2x8x1xf32>
    %31 = math.exp %30 : vector<2x8x1xf32>
    %cst_14 = arith.constant dense<0.000000e+00> : vector<2x1xf32>
    %32 = vector.multi_reduction <add>, %31, %cst_14 [1] : vector<2x8x1xf32> to vector<2x1xf32>
    %33 = vector.shape_cast %32 : vector<2x1xf32> to vector<2x1x1xf32>
    %34 = vector.broadcast %33 : vector<2x1x1xf32> to vector<2x8x1xf32>
    %35 = arith.divf %31, %34 : vector<2x8x1xf32>
    %36 = vector.shape_cast %35 : vector<2x8x1xf32> to vector<2x8xf32>
    %37 = vector.shape_cast %36 : vector<2x8xf32> to vector<1x2x8xf32>
    %c0_15 = arith.constant 0 : index
    %c0_16 = arith.constant 0 : index
    %c0_17 = arith.constant 0 : index
    %38 = vector.load %arg8[%c0_15, %c0_16, %c0_17] : memref<1x2x8xf32, #tpu.memory_space<vmem>>, vector<1x2x8xf32>
    tpu.vector_store %arg8[%c0_15, %c0_16, %c0_17], %37 {strides = array<i32>} : memref<1x2x8xf32, #tpu.memory_space<vmem>>, vector<1x2x8xf32>,
    %39 = vector.broadcast %35 : vector<2x8x1xf32> to vector<2x8x128xf32>
    %40 = arith.mulf %0, %39 : vector<2x8x128xf32>
    %cst_18 = arith.constant dense<0.000000e+00> : vector<2x128xf32>
    %41 = vector.multi_reduction <add>, %40, %cst_18 [1] : vector<2x8x128xf32> to vector<2x128xf32>
    %c0_19 = arith.constant 0 : index
    %c0_20 = arith.constant 0 : index
    %42 = vector.load %arg6[%c0_19, %c0_20] : memref<128x16xf32, #tpu.memory_space<vmem>>, vector<128x16xf32>
    %cst_21 = arith.constant dense<0.000000e+00> : vector<2x16xf32>
    %43 = tpu.matmul %41, %42, %cst_21 {dimension_numbers = #tpu.dot_dimension_numbers<[1], [0], [0], [1], [0, 0, 1, 1], [], []>} : vector<2x128xf32>, vector<128x16xf32>, vector<2x16xf32> -> vector<2x16xf32>
    %c0_22 = arith.constant 0 : index
    %c0_23 = arith.constant 0 : index
    %44 = vector.load %arg7[%c0_22, %c0_23] : memref<1x16xf32, #tpu.memory_space<vmem>>, vector<1x16xf32>
    %45 = vector.broadcast %44 : vector<1x16xf32> to vector<2x16xf32>
    %46 = arith.addf %43, %45 : vector<2x16xf32>
    %47 = vector.shape_cast %46 : vector<2x16xf32> to vector<1x2x16xf32>
    %c0_24 = arith.constant 0 : index
    %c0_25 = arith.constant 0 : index
    %c0_26 = arith.constant 0 : index
    %48 = vector.load %arg9[%c0_24, %c0_25, %c0_26] : memref<1x2x16xf32, #tpu.memory_space<vmem>>, vector<1x2x16xf32>
    tpu.vector_store %arg9[%c0_24, %c0_25, %c0_26], %47 {strides = array<i32>} : memref<1x2x16xf32, #tpu.memory_space<vmem>>, vector<1x2x16xf32>,
    return
  }
  func.func @transform_0(%arg0: i32) -> (i32, i32, i32) {
    %c0_i32 = arith.constant 0 : i32
    %c0_i32_0 = arith.constant 0 : i32
    %c0_i32_1 = arith.constant 0 : i32
    return %arg0, %c0_i32, %c0_i32_0 : i32, i32, i32
  }
  func.func @transform_1(%arg0: i32) -> (i32, i32) {
    %c0_i32 = arith.constant 0 : i32
    %c0_i32_0 = arith.constant 0 : i32
    %c0_i32_1 = arith.constant 0 : i32
    return %c0_i32, %c0_i32_0 : i32, i32
  }
  func.func @transform_2(%arg0: i32) -> (i32, i32) {
    %c0_i32 = arith.constant 0 : i32
    %c0_i32_0 = arith.constant 0 : i32
    %c0_i32_1 = arith.constant 0 : i32
    return %c0_i32, %c0_i32_0 : i32, i32
  }
  func.func @transform_3(%arg0: i32) -> (i32, i32) {
    %c0_i32 = arith.constant 0 : i32
    %c0_i32_0 = arith.constant 0 : i32
    %c0_i32_1 = arith.constant 0 : i32
    return %c0_i32, %c0_i32_0 : i32, i32
  }
  func.func @transform_4(%arg0: i32) -> i32 {
    %c0_i32 = arith.constant 0 : i32
    %c0_i32_0 = arith.constant 0 : i32
    return %c0_i32 : i32
  }
  func.func @transform_5(%arg0: i32) -> (i32, i32) {
    %c0_i32 = arith.constant 0 : i32
    %c0_i32_0 = arith.constant 0 : i32
    %c0_i32_1 = arith.constant 0 : i32
    return %c0_i32, %c0_i32_0 : i32, i32
  }
  func.func @transform_6(%arg0: i32) -> (i32, i32) {
    %c0_i32 = arith.constant 0 : i32
    %c0_i32_0 = arith.constant 0 : i32
    %c0_i32_1 = arith.constant 0 : i32
    return %c0_i32, %c0_i32_0 : i32, i32
  }
  func.func @transform_7(%arg0: i32) -> (i32, i32, i32) {
    %c0_i32 = arith.constant 0 : i32
    %c0_i32_0 = arith.constant 0 : i32
    %c0_i32_1 = arith.constant 0 : i32
    return %arg0, %c0_i32, %c0_i32_0 : i32, i32, i32
  }
  func.func @transform_8(%arg0: i32) -> (i32, i32, i32) {
    %c0_i32 = arith.constant 0 : i32
    %c0_i32_0 = arith.constant 0 : i32
    %c0_i32_1 = arith.constant 0 : i32
    return %arg0, %c0_i32, %c0_i32_0 : i32, i32, i32
  }
}

</mosaic_0001>

<llo_original>
// kernel: attr_classifier_head.1
$region0: #{attr_classifier_head.1}
  #allocation0 [shape = 'u32[]', space=smem, size = 0x4, offset = 0x4, fixed_abs, tag = 'smem constant byte address 0x4 - core index']
  #allocation1 [shape = 'u32[144,128]{1,0:T(1,128)}', space=vmem, size = 0x12000, scoped, tag = 'internal scratch']
  #allocation2 [shape = 'f32[1]{0:T(128)S(6)}', space=smem, size = 0x200, scoped, tag = 'scoped memory for attr_classifier_head.1']
  %s0 = inlined_call_operand.vmem [shape: f32[2,8,128], index: 0, kind: input, shape index: {}]
  %s1 = inlined_call_operand.vmem [shape: bf16[128,256], index: 1, kind: input, shape index: {}]
  %s2 = inlined_call_operand.vmem [shape: f32[1,256], index: 2, kind: input, shape index: {}]
  %s3 = inlined_call_operand.vmem [shape: bf16[256,8], index: 3, kind: input, shape index: {}]
  %s4 = inlined_call_operand.<no memory space> [shape: f32[1], index: 4, kind: input, shape index: {}]
  %s5 = inlined_call_operand.vmem [shape: f32[128,16], index: 5, kind: input, shape index: {}]
  %s6 = inlined_call_operand.vmem [shape: f32[1,16], index: 6, kind: input, shape index: {}]
  %s7 = inlined_call_operand.hbm [shape: f32[1,2,8], index: 7, kind: output, shape index: {0}]
  %s8 = inlined_call_operand.hbm [shape: f32[1,2,16], index: 8, kind: output, shape index: {1}]
  %9 = xla_tuple %s7, %s8
  %s10 = sld [smem:[#allocation0]]
  $region46: #{attr_classifier_head.1} parent=0
    _
  %s12 = ssub.s32 1, %s10
  %s13 = scalar_select 0, %s12, %s10
  %14 = sst [smem:[#allocation2]] %s4
  $region1: #{attr_classifier_head.1} parent=0
    #allocation3 [shape = 'u8[1024]{0}', space=vmem, size = 0x400, scoped, tag = 'output window, operand 0, single buffered']
    #allocation4 [shape = 's32[1]{0}', space=sflag, size = 0x4, scoped, tag = 'scoped memory for attr_classifier_head.1']
    #allocation5 [shape = 'u8[1024]{0}', space=vmem, size = 0x400, scoped, tag = 'output window, operand 1, single buffered']
    #allocation6 [shape = 's32[1]{0}', space=sflag, size = 0x4, scoped, tag = 'scoped memory for attr_classifier_head.1']
    %15 = vsyncpa [#allocation4], 0
    %16 = vsyncpa [#allocation6], 0
    // Predicated region
    $region2: #{attr_classifier_head.1} parent=1 // pred_check
      _
    $region3: #{attr_classifier_head.1} parent=1 // pred_check_branch
      %18 = sbr.rel (0) target = $region5
    $region4: #{attr_classifier_head.1} parent=1 // pred_region
      _
    $region5: #{attr_classifier_head.1} parent=1 // pred_fallthru
      _
    // Predicated region
    $region6: #{attr_classifier_head.1} parent=1 // pred_check
      _
    $region7: #{attr_classifier_head.1} parent=1 // pred_check_branch
      %20 = sbr.rel (0) target = $region9
    $region8: #{attr_classifier_head.1} parent=1 // pred_region
      _
    $region9: #{attr_classifier_head.1} parent=1 // pred_fallthru
      _
    // Predicated region
    $region10: #{attr_classifier_head.1} parent=1 // pred_check
      _
    $region11: #{attr_classifier_head.1} parent=1 // pred_check_branch
      %22 = sbr.rel (0) target = $region13
    $region12: #{attr_classifier_head.1} parent=1 // pred_region
      _
    $region13: #{attr_classifier_head.1} parent=1 // pred_fallthru
      _
    // Predicated region
    $region14: #{attr_classifier_head.1} parent=1 // pred_check
      _
    $region15: #{attr_classifier_head.1} parent=1 // pred_check_branch
      %24 = sbr.rel (0) target = $region17
    $region16: #{attr_classifier_head.1} parent=1 // pred_region
      _
    $region17: #{attr_classifier_head.1} parent=1 // pred_fallthru
      _
    // Predicated region
    $region18: #{attr_classifier_head.1} parent=1 // pred_check
      _
    $region19: #{attr_classifier_head.1} parent=1 // pred_check_branch
      %26 = sbr.rel (0) target = $region21
    $region20: #{attr_classifier_head.1} parent=1 // pred_region
      _
    $region21: #{attr_classifier_head.1} parent=1 // pred_fallthru
      _
    // Predicated region
    $region22: #{attr_classifier_head.1} parent=1 // pred_check
      _
    $region23: #{attr_classifier_head.1} parent=1 // pred_check_branch
      %28 = sbr.rel (0) target = $region25
    $region24: #{attr_classifier_head.1} parent=1 // pred_region
      _
    $region25: #{attr_classifier_head.1} parent=1 // pred_fallthru
      _
    // Predicated region
    $region26: #{attr_classifier_head.1} parent=1 // pred_check
      _
    $region27: #{attr_classifier_head.1} parent=1 // pred_check_branch
      %30 = sbr.rel (0) target = $region29
    $region28: #{attr_classifier_head.1} parent=1 // pred_region
      _
    $region29: #{attr_classifier_head.1} parent=1 // pred_fallthru
      _
    %v32 = vld [vmem:[%s0] sm:$0xff]
    %v33 = vld [vmem:[%s0 + $0x8] sm:$0xff]
    %v34 = vpack.c.bf16 %v33, %v32
    %v35 = vld [vmem:[%s1] sm:$0xff]
    %v36 = vld [vmem:[%s1 + $0x8] sm:$0xff]
    %v37 = vld [vmem:[%s1 + $0x10] sm:$0xff]
    %v38 = vld [vmem:[%s1 + $0x18] sm:$0xff]
    %v39 = vld [vmem:[%s1 + $0x20] sm:$0xff]
    %v40 = vld [vmem:[%s1 + $0x28] sm:$0xff]
    %v41 = vld [vmem:[%s1 + $0x30] sm:$0xff]
    %v42 = vld [vmem:[%s1 + $0x38] sm:$0xff]
    %v43 = vld [vmem:[%s1 + $0x40] sm:$0xff]
    %v44 = vld [vmem:[%s1 + $0x48] sm:$0xff]
    %v45 = vld [vmem:[%s1 + $0x50] sm:$0xff]
    %v46 = vld [vmem:[%s1 + $0x58] sm:$0xff]
    %v47 = vld [vmem:[%s1 + $0x60] sm:$0xff]
    %v48 = vld [vmem:[%s1 + $0x68] sm:$0xff]
    %v49 = vld [vmem:[%s1 + $0x70] sm:$0xff]
    %v50 = vld [vmem:[%s1 + $0x78] sm:$0xff]
    %v51 = vld [vmem:[%s2] sm:$0x3]
    %v53 = vlaneseq
    %v54 = vshrl.u32 %v53, 7
    %v55 = vsub.s32 0, %v54
    %v56 = vrot.slane %v51, %v55
    %v57 = vlaneseq
    %v58 = vshrl.u32 %v57, 7
    %v59 = vsub.s32 1, %v58
    %v60 = vrot.slane %v51, %v59
    %v79 = vunpack.c.l.b16 %v35
    %v80 = vunpack.c.h.b16 %v35
    %v81 = vunpack.c.l.b16 %v36
    %v82 = vunpack.c.h.b16 %v36
    %v83 = vunpack.c.l.b16 %v37
    %v84 = vunpack.c.h.b16 %v37
    %v85 = vunpack.c.l.b16 %v38
    %v86 = vunpack.c.h.b16 %v38
    %v87 = vunpack.c.l.b16 %v39
    %v88 = vunpack.c.h.b16 %v39
    %v89 = vunpack.c.l.b16 %v40
    %v90 = vunpack.c.h.b16 %v40
    %v91 = vunpack.c.l.b16 %v41
    %v92 = vunpack.c.h.b16 %v41
    %v93 = vunpack.c.l.b16 %v42
    %v94 = vunpack.c.h.b16 %v42
    %v95 = vunpack.c.l.b16 %v43
    %v96 = vunpack.c.h.b16 %v43
    %v97 = vunpack.c.l.b16 %v44
    %v98 = vunpack.c.h.b16 %v44
    %v99 = vunpack.c.l.b16 %v45
    %v100 = vunpack.c.h.b16 %v45
    %v101 = vunpack.c.l.b16 %v46
    %v102 = vunpack.c.h.b16 %v46
    %v103 = vunpack.c.l.b16 %v47
    %v104 = vunpack.c.h.b16 %v47
    %v105 = vunpack.c.l.b16 %v48
    %v106 = vunpack.c.h.b16 %v48
    %v107 = vunpack.c.l.b16 %v49
    %v108 = vunpack.c.h.b16 %v49
    %v109 = vunpack.c.l.b16 %v50
    %v110 = vunpack.c.h.b16 %v50
    %v111 = vpack.c.b16 %v81, %v79
    %v112 = vpack.c.b16 %v82, %v80
    %v113 = vpack.c.b16 %v85, %v83
    %v114 = vpack.c.b16 %v86, %v84
    %v115 = vpack.c.b16 %v89, %v87
    %v116 = vpack.c.b16 %v90, %v88
    %v117 = vpack.c.b16 %v93, %v91
    %v118 = vpack.c.b16 %v94, %v92
    %v119 = vpack.c.b16 %v97, %v95
    %v120 = vpack.c.b16 %v98, %v96
    %v121 = vpack.c.b16 %v101, %v99
    %v122 = vpack.c.b16 %v102, %v100
    %v123 = vpack.c.b16 %v105, %v103
    %v124 = vpack.c.b16 %v106, %v104
    %v125 = vpack.c.b16 %v109, %v107
    %v126 = vpack.c.b16 %v110, %v108
    %143 = vmatprep.subr.bf16.mxu0 %v126
    %144 = vmatpush1.bf16.msra.mxu0 %v125
    %145 = vmatprep.subr.bf16.mxu0 %v124
    %146 = vmatpush1.bf16.msra.mxu0 %v123
    %147 = vmatprep.subr.bf16.mxu0 %v122
    %148 = vmatpush1.bf16.msra.mxu0 %v121
    %149 = vmatprep.subr.bf16.mxu0 %v120
    %150 = vmatpush1.bf16.msra.mxu0 %v119
    %151 = vmatprep.subr.bf16.mxu0 %v118
    %152 = vmatpush1.bf16.msra.mxu0 %v117
    %153 = vmatprep.subr.bf16.mxu0 %v116
    %154 = vmatpush1.bf16.msra.mxu0 %v115
    %155 = vmatprep.subr.bf16.mxu0 %v114
    %156 = vmatpush1.bf16.msra.mxu0 %v113
    %157 = vmatprep.subr.bf16.mxu0 %v112
    %158 = vmatpush1.bf16.msra.mxu0 %v111
    %159 = vmatprep.subr.bf16.mxu0 0
    %160 = vmatpush2.bf16.msra.mxu0 0
    %161 = vmatprep.subr.bf16.mxu0 0
    %162 = vmatpush2.bf16.msra.mxu0 0
    %163 = vmatprep.subr.bf16.mxu0 0
    %164 = vmatpush2.bf16.msra.mxu0 0
    %165 = vmatprep.subr.bf16.mxu0 0
    %166 = vmatpush2.bf16.msra.mxu0 0
    %167 = vmatprep.subr.bf16.mxu0 0
    %168 = vmatpush2.bf16.msra.mxu0 0
    %169 = vmatprep.subr.bf16.mxu0 0
    %170 = vmatpush2.bf16.msra.mxu0 0
    %171 = vmatprep.subr.bf16.mxu0 0
    %172 = vmatpush2.bf16.msra.mxu0 0
    %173 = vmatprep.subr.bf16.mxu0 0
    %174 = vmatpush2.bf16.msra.mxu0 0
    %175 = vmatprep.mubr.bf16.mxu0 0
    %176 = vmatmul.mubr.bf16.gmra.mxu0 %v34
    %v177 = vpop.f32.mrf.mxu0
    %v178 = vadd.f32 %v56, %v177
    %v179 = vpop.f32.mrf.mxu0
    %v180 = vadd.f32 %v60, %v179
    %v181 = vpop.f32.mrf.mxu0
    %v182 = vadd.f32 %v56, %v181
    %v183 = vpop.f32.mrf.mxu0
    %v184 = vadd.f32 %v60, %v183
    %185 = vdwg.mxu0
    %v186 = vmax.f32 %v178, 0.0
    %v187 = vmax.f32 %v180, 0.0
    %v188 = vmax.f32 %v182, 0.0
    %v189 = vmax.f32 %v184, 0.0
    %v190 = vpack.c.bf16 %v188, %v186
    %v191 = vpack.c.bf16 %v189, %v187
    %v192 = vld [vmem:[%s3] sm:$0xf]
    %v193 = vld [vmem:[%s3 + $0x4] sm:$0xf]
    %v194 = vld [vmem:[%s3 + $0x8] sm:$0xf]
    %v195 = vld [vmem:[%s3 + $0xc] sm:$0xf]
    %v196 = vld [vmem:[%s3 + $0x10] sm:$0xf]
    %v197 = vld [vmem:[%s3 + $0x14] sm:$0xf]
    %v198 = vld [vmem:[%s3 + $0x18] sm:$0xf]
    %v199 = vld [vmem:[%s3 + $0x1c] sm:$0xf]
    %v200 = vld [vmem:[%s3 + $0x20] sm:$0xf]
    %v201 = vld [vmem:[%s3 + $0x24] sm:$0xf]
    %v202 = vld [vmem:[%s3 + $0x28] sm:$0xf]
    %v203 = vld [vmem:[%s3 + $0x2c] sm:$0xf]
    %v204 = vld [vmem:[%s3 + $0x30] sm:$0xf]
    %v205 = vld [vmem:[%s3 + $0x34] sm:$0xf]
    %v206 = vld [vmem:[%s3 + $0x38] sm:$0xf]
    %v207 = vld [vmem:[%s3 + $0x3c] sm:$0xf]
    %v208 = vld [vmem:[%s3 + $0x40] sm:$0xf]
    %v209 = vld [vmem:[%s3 + $0x44] sm:$0xf]
    %v210 = vld [vmem:[%s3 + $0x48] sm:$0xf]
    %v211 = vld [vmem:[%s3 + $0x4c] sm:$0xf]
    %v212 = vld [vmem:[%s3 + $0x50] sm:$0xf]
    %v213 = vld [vmem:[%s3 + $0x54] sm:$0xf]
    %v214 = vld [vmem:[%s3 + $0x58] sm:$0xf]
    %v215 = vld [vmem:[%s3 + $0x5c] sm:$0xf]
    %v216 = vld [vmem:[%s3 + $0x60] sm:$0xf]
    %v217 = vld [vmem:[%s3 + $0x64] sm:$0xf]
    %v218 = vld [vmem:[%s3 + $0x68] sm:$0xf]
    %v219 = vld [vmem:[%s3 + $0x6c] sm:$0xf]
    %v220 = vld [vmem:[%s3 + $0x70] sm:$0xf]
    %v221 = vld [vmem:[%s3 + $0x74] sm:$0xf]
    %v222 = vld [vmem:[%s3 + $0x78] sm:$0xf]
    %v223 = vld [vmem:[%s3 + $0x7c] sm:$0xf]
    %v256 = vunpack.c.l.b16 %v192
    %v257 = vunpack.c.l.b16 %v193
    %v258 = vunpack.c.l.b16 %v194
    %v259 = vunpack.c.l.b16 %v195
    %v260 = vunpack.c.l.b16 %v196
    %v261 = vunpack.c.l.b16 %v197
    %v262 = vunpack.c.l.b16 %v198
    %v263 = vunpack.c.l.b16 %v199
    %v264 = vunpack.c.l.b16 %v200
    %v265 = vunpack.c.l.b16 %v201
    %v266 = vunpack.c.l.b16 %v202
    %v267 = vunpack.c.l.b16 %v203
    %v268 = vunpack.c.l.b16 %v204
    %v269 = vunpack.c.l.b16 %v205
    %v270 = vunpack.c.l.b16 %v206
    %v271 = vunpack.c.l.b16 %v207
    %v272 = vunpack.c.l.b16 %v208
    %v273 = vunpack.c.l.b16 %v209
    %v274 = vunpack.c.l.b16 %v210
    %v275 = vunpack.c.l.b16 %v211
    %v276 = vunpack.c.l.b16 %v212
    %v277 = vunpack.c.l.b16 %v213
    %v278 = vunpack.c.l.b16 %v214
    %v279 = vunpack.c.l.b16 %v215
    %v280 = vunpack.c.l.b16 %v216
    %v281 = vunpack.c.l.b16 %v217
    %v282 = vunpack.c.l.b16 %v218
    %v283 = vunpack.c.l.b16 %v219
    %v284 = vunpack.c.l.b16 %v220
    %v285 = vunpack.c.l.b16 %v221
    %v286 = vunpack.c.l.b16 %v222
    %v287 = vunpack.c.l.b16 %v223
    %v288 = vpack.c.b16 %v257, %v256
    %v289 = vpack.c.b16 %v259, %v258
    %v290 = vpack.c.b16 %v261, %v260
    %v291 = vpack.c.b16 %v263, %v262
    %v292 = vpack.c.b16 %v265, %v264
    %v293 = vpack.c.b16 %v267, %v266
    %v294 = vpack.c.b16 %v269, %v268
    %v295 = vpack.c.b16 %v271, %v270
    %v296 = vpack.c.b16 %v273, %v272
    %v297 = vpack.c.b16 %v275, %v274
    %v298 = vpack.c.b16 %v277, %v276
    %v299 = vpack.c.b16 %v279, %v278
    %v300 = vpack.c.b16 %v281, %v280
    %v301 = vpack.c.b16 %v283, %v282
    %v302 = vpack.c.b16 %v285, %v284
    %v303 = vpack.c.b16 %v287, %v286
    %320 = vmatprep.subr.bf16.mxu0 0
    %321 = vmatpush1.bf16.msra.mxu0 %v295
    %322 = vmatprep.subr.bf16.mxu0 0
    %323 = vmatpush1.bf16.msra.mxu0 %v294
    %324 = vmatprep.subr.bf16.mxu0 0
    %325 = vmatpush1.bf16.msra.mxu0 %v293
    %326 = vmatprep.subr.bf16.mxu0 0
    %327 = vmatpush1.bf16.msra.mxu0 %v292
    %328 = vmatprep.subr.bf16.mxu0 0
    %329 = vmatpush1.bf16.msra.mxu0 %v291
    %330 = vmatprep.subr.bf16.mxu0 0
    %331 = vmatpush1.bf16.msra.mxu0 %v290
    %332 = vmatprep.subr.bf16.mxu0 0
    %333 = vmatpush1.bf16.msra.mxu0 %v289
    %334 = vmatprep.subr.bf16.mxu0 0
    %335 = vmatpush1.bf16.msra.mxu0 %v288
    %336 = vmatprep.subr.bf16.mxu0 0
    %337 = vmatpush2.bf16.msra.mxu0 %v303
    %338 = vmatprep.subr.bf16.mxu0 0
    %339 = vmatpush2.bf16.msra.mxu0 %v302
    %340 = vmatprep.subr.bf16.mxu0 0
    %341 = vmatpush2.bf16.msra.mxu0 %v301
    %342 = vmatprep.subr.bf16.mxu0 0
    %343 = vmatpush2.bf16.msra.mxu0 %v300
    %344 = vmatprep.subr.bf16.mxu0 0
    %345 = vmatpush2.bf16.msra.mxu0 %v299
    %346 = vmatprep.subr.bf16.mxu0 0
    %347 = vmatpush2.bf16.msra.mxu0 %v298
    %348 = vmatprep.subr.bf16.mxu0 0
    %349 = vmatpush2.bf16.msra.mxu0 %v297
    %350 = vmatprep.subr.bf16.mxu0 0
    %351 = vmatpush2.bf16.msra.mxu0 %v296
    %352 = vmatprep.mubr.bf16.mxu0 %v191
    %353 = vmatmul.mubr.bf16.gmra.mxu0 %v190
    %v354 = vpop.f32.mrf.mxu0
    %v355 = vadd.f32 0.0, %v354
    %v356 = vpop.f32.mrf.mxu0
    %v357 = vpop.f32.mrf.mxu0
    %v358 = vadd.f32 0.0, %v357
    %v359 = vpop.f32.mrf.mxu0
    %360 = vdwg.mxu0
    %v363 = vrot.slane %v355, 7
    %v364 = vrot.slane %v358, 7
    %vm367 = vcmask 1040384
    %v368 = vsel %vm367, 0.0, %v363
    %v369 = vsel %vm367, 0.0, %v364
    %v370 = vrot.slane %v355, 1
    %v371 = vrot.slane %v358, 1
    %vm374 = vcmask 1046528
    %v375 = vsel %vm374, %v370, 0.0
    %v376 = vsel %vm374, %v371, 0.0
    %379 = vrot.lane.b32.xlu0 %v368, 1
    %v380 = vpop.permute.xlu0 %379
    %381 = vrot.lane.b32.xlu0 %v369, 1
    %v382 = vpop.permute.xlu0 %381
    %v385 = vadd.f32 %v355, %v380
    %v386 = vadd.f32 %v358, %v382
    %389 = vrot.lane.b32.xlu0 %v375, 127
    %v390 = vpop.permute.xlu0 %389
    %391 = vrot.lane.b32.xlu0 %v376, 127
    %v392 = vpop.permute.xlu0 %391
    %v395 = vadd.f32 %v385, %v390
    %v396 = vadd.f32 %v386, %v392
    %s397 = sld [smem:[#allocation2]]
    %v398 = vstv %s397
    %v399 = vadd.f32 %v395, %v398
    %v400 = vadd.f32 %v396, %v398
    %v401 = vmax.f32 %v399, 0.0
    %v402 = vmax.f32 %v400, 0.0
    %vm403 = vcmask 15368
    %v404 = vsel %vm403, %v401, -inf
    %v405 = vrot.slane %v404, 4
    %v406 = vmax.f32 %v404, %v405
    %v407 = vrot.slane %v406, 2
    %v408 = vmax.f32 %v406, %v407
    %v409 = vrot.slane %v408, 1
    %v410 = vmax.f32 %v408, %v409
    %v411 = vsel %vm403, %v402, -inf
    %v412 = vrot.slane %v411, 4
    %v413 = vmax.f32 %v411, %v412
    %v414 = vrot.slane %v413, 2
    %v415 = vmax.f32 %v413, %v414
    %v416 = vrot.slane %v415, 1
    %v417 = vmax.f32 %v415, %v416
    %v418 = vsub.f32 %v401, %v410
    %v419 = vsub.f32 %v402, %v417
    %v420 = vmul.f32 %v418, 1.442695
    %v421 = vpow.pop %v420
    %v422 = vmul.f32 %v419, 1.442695
    %v423 = vpow.pop %v422
    %v424 = vsel %vm403, %v421, 0.0
    %v425 = vrot.slane %v424, 4
    %v426 = vadd.f32 %v424, %v425
    %v427 = vrot.slane %v426, 2
    %v428 = vadd.f32 %v426, %v427
    %v429 = vrot.slane %v428, 1
    %v430 = vadd.f32 %v428, %v429
    %v431 = vsel %vm403, %v423, 0.0
    %v432 = vrot.slane %v431, 4
    %v433 = vadd.f32 %v431, %v432
    %v434 = vrot.slane %v433, 2
    %v435 = vadd.f32 %v433, %v434
    %v436 = vrot.slane %v435, 1
    %v437 = vadd.f32 %v435, %v436
    %v438 = vrcp.pop %v430
    %v439 = vmul.f32 %v421, %v438
    %v440 = vrcp.pop %v437
    %v441 = vmul.f32 %v423, %v440
    %444 = vset.pattern.permute.xlu0 1
    %445 = vperm.xlu0 %444, %v439
    %v446 = vpop.permute.xlu0 %445
    %447 = vset.pattern.permute.xlu0 1
    %448 = vperm.xlu0 %447, %v441
    %v449 = vpop.permute.xlu0 %448
    %v450 = vlaneseq
    %v451 = vand.u32 %v450, 127
    %v452 = vlaneseq
    %v453 = vshrl.u32 %v452, 7
    %v454 = vsub.s32 %v451, %v453
    %v455 = vrot.slane %v446, %v454
    %v456 = vlaneseq
    %v457 = vshrl.u32 %v456, 7
    %v458 = vsub.s32 %v451, %v457
    %v459 = vrot.slane %v449, %v458
    %vm460 = vcmask 1041409
    %v461 = vsel %vm460, %v459, %v455
    %vm463 = vcmask 58368
    %464 = vst.msk [vmem:[#allocation3] sm:$0x3] %vm463, %v461
    %v467 = vmul.f32 %v32, %v446
    %v468 = vmul.f32 %v33, %v449
    %v469 = vrot.slane %v467, 4
    %v470 = vadd.f32 %v467, %v469
    %v471 = vrot.slane %v470, 2
    %v472 = vadd.f32 %v470, %v471
    %v473 = vrot.slane %v472, 1
    %v474 = vadd.f32 %v472, %v473
    %v475 = vrot.slane %v468, 4
    %v476 = vadd.f32 %v468, %v475
    %v477 = vrot.slane %v476, 2
    %v478 = vadd.f32 %v476, %v477
    %v479 = vrot.slane %v478, 1
    %v480 = vadd.f32 %v478, %v479
    %v481 = vld [vmem:[%s5] sm:$0xff]
    %v482 = vld [vmem:[%s5 + $0x8] sm:$0xff]
    %v483 = vld [vmem:[%s5 + $0x10] sm:$0xff]
    %v484 = vld [vmem:[%s5 + $0x18] sm:$0xff]
    %v485 = vld [vmem:[%s5 + $0x20] sm:$0xff]
    %v486 = vld [vmem:[%s5 + $0x28] sm:$0xff]
    %v487 = vld [vmem:[%s5 + $0x30] sm:$0xff]
    %v488 = vld [vmem:[%s5 + $0x38] sm:$0xff]
    %v489 = vld [vmem:[%s5 + $0x40] sm:$0xff]
    %v490 = vld [vmem:[%s5 + $0x48] sm:$0xff]
    %v491 = vld [vmem:[%s5 + $0x50] sm:$0xff]
    %v492 = vld [vmem:[%s5 + $0x58] sm:$0xff]
    %v493 = vld [vmem:[%s5 + $0x60] sm:$0xff]
    %v494 = vld [vmem:[%s5 + $0x68] sm:$0xff]
    %v495 = vld [vmem:[%s5 + $0x70] sm:$0xff]
    %v496 = vld [vmem:[%s5 + $0x78] sm:$0xff]
    %v497 = vld [vmem:[%s6] sm:$0x1]
    %v499 = vlaneseq
    %v500 = vshrl.u32 %v499, 7
    %v501 = vsub.s32 0, %v500
    %v502 = vrot.slane %v497, %v501
    %v506 = vsel %vm460, %v480, %v474
    %508 = vmatprep.subr.mxu0 0.0
    %509 = vmatpush1.msra.mxu0 %v496
    %510 = vmatprep.subr.mxu0 0.0
    %511 = vmatpush1.msra.mxu0 %v495
    %512 = vmatprep.subr.mxu0 0.0
    %513 = vmatpush1.msra.mxu0 %v494
    %514 = vmatprep.subr.mxu0 0.0
    %515 = vmatpush1.msra.mxu0 %v493
    %516 = vmatprep.subr.mxu0 0.0
    %517 = vmatpush1.msra.mxu0 %v492
    %518 = vmatprep.subr.mxu0 0.0
    %519 = vmatpush1.msra.mxu0 %v491
    %520 = vmatprep.subr.mxu0 0.0
    %521 = vmatpush1.msra.mxu0 %v490
    %522 = vmatprep.subr.mxu0 0.0
    %523 = vmatpush1.msra.mxu0 %v489
    %524 = vmatprep.subr.mxu0 0.0
    %525 = vmatpush1.msra.mxu0 %v488
    %526 = vmatprep.subr.mxu0 0.0
    %527 = vmatpush1.msra.mxu0 %v487
    %528 = vmatprep.subr.mxu0 0.0
    %529 = vmatpush1.msra.mxu0 %v486
    %530 = vmatprep.subr.mxu0 0.0
    %531 = vmatpush1.msra.mxu0 %v485
    %532 = vmatprep.subr.mxu0 0.0
    %533 = vmatpush1.msra.mxu0 %v484
    %534 = vmatprep.subr.mxu0 0.0
    %535 = vmatpush1.msra.mxu0 %v483
    %536 = vmatprep.subr.mxu0 0.0
    %537 = vmatpush1.msra.mxu0 %v482
    %538 = vmatprep.subr.mxu0 0.0
    %539 = vmatpush1.msra.mxu0 %v481
    %540 = vmatprep.subr.mxu0 0.0
    %541 = vmatpush2.msra.mxu0 0.0
    %542 = vmatprep.subr.mxu0 0.0
    %543 = vmatpush2.msra.mxu0 0.0
    %544 = vmatprep.subr.mxu0 0.0
    %545 = vmatpush2.msra.mxu0 0.0
    %546 = vmatprep.subr.mxu0 0.0
    %547 = vmatpush2.msra.mxu0 0.0
    %548 = vmatprep.subr.mxu0 0.0
    %549 = vmatpush2.msra.mxu0 0.0
    %550 = vmatprep.subr.mxu0 0.0
    %551 = vmatpush2.msra.mxu0 0.0
    %552 = vmatprep.subr.mxu0 0.0
    %553 = vmatpush2.msra.mxu0 0.0
    %554 = vmatprep.subr.mxu0 0.0
    %555 = vmatpush2.msra.mxu0 0.0
    %556 = vmatprep.subr.mxu0 0.0
    %557 = vmatpush2.msra.mxu0 0.0
    %558 = vmatprep.subr.mxu0 0.0
    %559 = vmatpush2.msra.mxu0 0.0
    %560 = vmatprep.subr.mxu0 0.0
    %561 = vmatpush2.msra.mxu0 0.0
    %562 = vmatprep.subr.mxu0 0.0
    %563 = vmatpush2.msra.mxu0 0.0
    %564 = vmatprep.subr.mxu0 0.0
    %565 = vmatpush2.msra.mxu0 0.0
    %566 = vmatprep.subr.mxu0 0.0
    %567 = vmatpush2.msra.mxu0 0.0
    %568 = vmatprep.subr.mxu0 0.0
    %569 = vmatpush2.msra.mxu0 0.0
    %570 = vmatprep.subr.mxu0 0.0
    %571 = vmatpush2.msra.mxu0 0.0
    %572 = vmatprep.mubr.f32.mxu0 0.0
    %573 = vmatmul.mubr.f32.gmra.mxu0 %v506
    %v574 = vpop.f32.mrf.mxu0
    %v575 = vadd.f32 %v502, %v574
    %v576 = vpop.f32.mrf.mxu0
    %577 = vdwg.mxu0
    %vm578 = vcmask 123904
    %579 = vst.msk [vmem:[#allocation5] sm:$0x3] %vm578, %v575
    // Predicated region
    $region30: #{attr_classifier_head.1} parent=1 // pred_check
      _
    $region31: #{attr_classifier_head.1} parent=1 // pred_check_branch
      %581 = sbr.rel (0) target = $region33
    $region32: #{attr_classifier_head.1} parent=1 // pred_region
      %s583 = ssub.s32 32, 32
      %584 = vsyncadd [#allocation4], %s583
      %s586 = sshll.u32 [#allocation3], 4
      %s587 = int_to_ptr.vmem [resolvable:$true] %s586
      %589 = dma.vmem_to_hbm [thread:$0]  %s587, 32, %s7, [#allocation4]
    $region33: #{attr_classifier_head.1} parent=1 // pred_fallthru
      _
    // Predicated region
    $region34: #{attr_classifier_head.1} parent=1 // pred_check
      _
    $region35: #{attr_classifier_head.1} parent=1 // pred_check_branch
      %591 = sbr.rel (0) target = $region37
    $region36: #{attr_classifier_head.1} parent=1 // pred_region
      %s593 = ssub.s32 32, 32
      %594 = vsyncadd [#allocation6], %s593
      %s596 = sshll.u32 [#allocation5], 4
      %s597 = int_to_ptr.vmem [resolvable:$true] %s596
      %599 = dma.vmem_to_hbm [thread:$0]  %s597, 32, %s8, [#allocation6]
    $region37: #{attr_classifier_head.1} parent=1 // pred_fallthru
      _
    // Predicated region
    $region38: #{attr_classifier_head.1} parent=1 // pred_check
      _
    $region39: #{attr_classifier_head.1} parent=1 // pred_check_branch
      %601 = sbr.rel (0) target = $region41
    $region40: #{attr_classifier_head.1} parent=1 // pred_region
      %602 = dma.done [#allocation4], 32
    $region41: #{attr_classifier_head.1} parent=1 // pred_fallthru
      _
    // Predicated region
    $region42: #{attr_classifier_head.1} parent=1 // pred_check
      _
    $region43: #{attr_classifier_head.1} parent=1 // pred_check_branch
      %604 = sbr.rel (0) target = $region45
    $region44: #{attr_classifier_head.1} parent=1 // pred_region
      %605 = dma.done [#allocation6], 32
    $region45: #{attr_classifier_head.1} parent=1 // pred_fallthru
      _
    %606 = vsyncpa [#allocation4], 1
    %607 = vsyncpa [#allocation6], 1

</llo_original>
